<compile_context>
chip_gen: v7x
topology: tpu7x:2x2x1
jax: 0.10.0
libtpu: 0.0.40
codegen_flags: <defaults>
</compile_context>

<pallas_src>
import functools

import jax
import jax.numpy as jnp
from jax.experimental import pallas as pl
from jax.experimental.pallas import tpu as pltpu

REPARAM_NOISE = 0.001


def _round_up(x, m):
    return (x + m - 1) // m * m


def dynamics_kernel(state_ref, action_ref, w1s_ref, w1a_ref, b1_ref,
                    w2_ref, b2_ref, wh_ref, bh_ref, out_ref, *, state_dim):
    """One batch tile of the fused MLP.

    fc1 = state@W1s + action@W1a + b1 (concat folded into the kernel);
    mu/sigma heads fused into one matmul whose (TB, 2*S) result is written as
    a single slab: left half mu, right half sigmoid+clamp(0.001).
    MXU inputs are bf16; accumulation and all elementwise math stay f32.
    """
    mxu_dt = w1s_ref.dtype

    s = state_ref[...].astype(mxu_dt)
    a = action_ref[...].astype(mxu_dt)

    # fc1 + ReLU : two small MXU accumulations replace the wrapper-side concat.
    h1 = (jnp.dot(s, w1s_ref[...], preferred_element_type=jnp.float32)
          + jnp.dot(a, w1a_ref[...], preferred_element_type=jnp.float32)
          + b1_ref[...])
    h1 = jnp.maximum(h1, 0.0)

    # fc2 + ReLU
    h2 = jnp.dot(h1.astype(mxu_dt), w2_ref[...],
                 preferred_element_type=jnp.float32) + b2_ref[...]
    h2 = jnp.maximum(h2, 0.0)

    # Fused [mu | sigma] head: single matmul, single lane-contiguous output.
    head = jnp.dot(h2.astype(mxu_dt), wh_ref[...],
                   preferred_element_type=jnp.float32) + bh_ref[...]

    # Right half of the slab is sigma: sigmoid then clamp(min=0.001), in f32.
    col = jax.lax.broadcasted_iota(jnp.int32, head.shape, 1)
    sig = jnp.maximum(jax.nn.sigmoid(head), REPARAM_NOISE)
    out_ref[...] = jnp.where(col >= state_dim, sig, head)


def prepare_params(params, mxu_dtype=jnp.bfloat16):
    """One-time conversion: PyTorch-layout params -> fused kernel layout.

    (w1, b1, w2, b2, wmu, bmu, wsg, bsg)  ->  (w1_s, w1_a, b1, w2, b2, w_head, b_head)
    with matmul weights cast to `mxu_dtype`, biases kept f32, and the mu/sigma
    head weights fused along the output axis.
    """
    w1, b1, w2, b2, wmu, bmu, wsg, bsg = params
    state_dim = wmu.shape[1]
    w1_s = w1[:state_dim].astype(mxu_dtype)
    w1_a = w1[state_dim:].astype(mxu_dtype)
    w_head = jnp.concatenate([wmu, wsg], axis=1).astype(mxu_dtype)
    b_head = jnp.concatenate([bmu, bsg], axis=1).astype(jnp.float32)
    return (w1_s, w1_a, b1.astype(jnp.float32), w2.astype(mxu_dtype),
            b2.astype(jnp.float32), w_head, b_head)


def dynamics_forward(state, action, kparams, *, tb=512):
    """Batch-tiled Pallas forward. Returns (mu, sigma_clamped)."""
    w1s, w1a, b1, w2, b2, wh, bh = kparams
    B, S = state.shape
    A = action.shape[1]
    F1 = w1s.shape[1]
    F2 = w2.shape[1]
    assert wh.shape[1] == 2 * S

    # Batch tile: sublane-aligned (multiple of 8), up to `tb` rows per step.
    TB = min(tb, _round_up(B, 8))
    B_pad = _round_up(B, TB)
    if B_pad != B:
        state = jnp.pad(state, ((0, B_pad - B), (0, 0)))
        action = jnp.pad(action, ((0, B_pad - B), (0, 0)))

    grid = (B_pad // TB,)

    def batch_spec(width):
        return pl.BlockSpec((TB, width), lambda i: (i, 0))

    def const_spec(shape):
        return pl.BlockSpec(shape, lambda i: (0,) * len(shape))

    d_in = S + A
    flops = 2 * B_pad * (d_in * F1 + F1 * F2 + F2 * 2 * S)
    bytes_accessed = (
        state.size * state.dtype.itemsize
        + action.size * action.dtype.itemsize
        + sum(int(p.size) * p.dtype.itemsize for p in kparams)
        + B_pad * 2 * S * 4)
    cost = pl.CostEstimate(flops=flops,
                           transcendentals=B_pad * 2 * S,
                           bytes_accessed=bytes_accessed)

    out = pl.pallas_call(
        functools.partial(dynamics_kernel, state_dim=S),
        out_shape=jax.ShapeDtypeStruct((B_pad, 2 * S), jnp.float32),
        grid=grid,
        in_specs=[
            batch_spec(S),                # state tile
            batch_spec(A),                # action tile
            const_spec(w1s.shape),        # W1 (state part)   -- resident
            const_spec(w1a.shape),        # W1 (action part)  -- resident
            const_spec(b1.shape),         # b1
            const_spec(w2.shape),         # W2
            const_spec(b2.shape),         # b2
            const_spec(wh.shape),         # fused [Wmu | Wsigma]
            const_spec(bh.shape),         # fused [bmu | bsigma]
        ],
        out_specs=batch_spec(2 * S),      # single [mu | sigma] slab
        compiler_params=pltpu.CompilerParams(
            dimension_semantics=("parallel",)),
        cost_estimate=cost,
    )(state, action, w1s, w1a, b1, w2, b2, wh, bh)

    mu = out[:B, :S]
    sigma = out[:B, S:]
    return mu, sigma


def init_params(key, state_dim, action_dim, fc1_dims=128, fc2_dims=128):
    """PyTorch-Linear-style uniform fan-in init; weights stored (in, out), f32."""
    d_in = state_dim + action_dim
    ks = jax.random.split(key, 8)

    def lin(kw, kb, fan_in, fan_out):
        bound = 1.0 / jnp.sqrt(fan_in)
        w = jax.random.uniform(kw, (fan_in, fan_out), jnp.float32, -bound, bound)
        b = jax.random.uniform(kb, (1, fan_out), jnp.float32, -bound, bound)
        return w, b

    w1, b1 = lin(ks[0], ks[1], d_in, fc1_dims)
    w2, b2 = lin(ks[2], ks[3], fc1_dims, fc2_dims)
    wmu, bmu = lin(ks[4], ks[5], fc2_dims, state_dim)
    wsg, bsg = lin(ks[6], ks[7], fc2_dims, state_dim)
    return (w1, b1, w2, b2, wmu, bmu, wsg, bsg)


if __name__ == "__main__":
    key = jax.random.PRNGKey(0)
    k_params, k_state, k_action = jax.random.split(key, 3)

    batch = 8
    state_dim = 8
    action_dim = 4

    params = init_params(k_params, state_dim, action_dim)
    kparams = prepare_params(params)   # split W1, fuse heads, cast MXU weights to bf16 (once)

    state = jax.random.normal(k_state, (batch, state_dim), jnp.float32)
    action = jax.random.normal(k_action, (batch, action_dim), jnp.float32)

    fwd = jax.jit(dynamics_forward)
    mu, sigma = fwd(state, action, kparams)
    jax.block_until_ready((mu, sigma))

    # Sanity check vs. pure-f32 JAX reference (loose tolerance: MXU inputs are bf16).
    x = jnp.concatenate([state, action], axis=-1)
    w1, b1, w2, b2, wmu, bmu, wsg, bsg = params
    h1 = jnp.maximum(x @ w1 + b1, 0.0)
    h2 = jnp.maximum(h1 @ w2 + b2, 0.0)
    mu_ref = h2 @ wmu + bmu
    sigma_ref = jnp.maximum(jax.nn.sigmoid(h2 @ wsg + bsg), REPARAM_NOISE)

    assert mu.shape == (batch, state_dim) and sigma.shape == (batch, state_dim)
    assert jnp.allclose(mu, mu_ref, atol=5e-2, rtol=5e-2)
    assert jnp.allclose(sigma, sigma_ref, atol=5e-2, rtol=5e-2)
    assert bool(jnp.all(sigma >= REPARAM_NOISE))

    print("KERNEL_OK")
</pallas_src>

<mosaic_0001>
module attributes {stable_mosaic.version = 11 : i64} {
  func.func @dynamics_kernel(%arg0: i32, %arg1: memref<8x8xf32, #tpu.memory_space<vmem>>, %arg2: memref<8x4xf32, #tpu.memory_space<vmem>>, %arg3: memref<8x128xbf16, #tpu.memory_space<vmem>>, %arg4: memref<4x128xbf16, #tpu.memory_space<vmem>>, %arg5: memref<1x128xf32, #tpu.memory_space<vmem>>, %arg6: memref<128x128xbf16, #tpu.memory_space<vmem>>, %arg7: memref<1x128xf32, #tpu.memory_space<vmem>>, %arg8: memref<128x16xbf16, #tpu.memory_space<vmem>>, %arg9: memref<1x16xf32, #tpu.memory_space<vmem>>, %arg10: memref<8x16xf32, #tpu.memory_space<vmem>>) attributes {dimension_semantics = [#tpu.dimension_semantics<parallel>], iteration_bounds = array<i64: 1>, scalar_prefetch = 0 : i64, scratch_operands = 0 : i64, tpu.core_type = #tpu.core_type<tc>, window_params = [{transform_indices = @transform_0, window_bounds = array<i64: 8, 8>}, {transform_indices = @transform_1, window_bounds = array<i64: 8, 4>}, {pipeline_mode = #tpu.pipeline_mode<synchronous>, transform_indices = @transform_2, window_bounds = array<i64: 8, 128>}, {pipeline_mode = #tpu.pipeline_mode<synchronous>, transform_indices = @transform_3, window_bounds = array<i64: 4, 128>}, {pipeline_mode = #tpu.pipeline_mode<synchronous>, transform_indices = @transform_4, window_bounds = array<i64: 1, 128>}, {pipeline_mode = #tpu.pipeline_mode<synchronous>, transform_indices = @transform_5, window_bounds = array<i64: 128, 128>}, {pipeline_mode = #tpu.pipeline_mode<synchronous>, transform_indices = @transform_6, window_bounds = array<i64: 1, 128>}, {pipeline_mode = #tpu.pipeline_mode<synchronous>, transform_indices = @transform_7, window_bounds = array<i64: 128, 16>}, {pipeline_mode = #tpu.pipeline_mode<synchronous>, transform_indices = @transform_8, window_bounds = array<i64: 1, 16>}, {transform_indices = @transform_9, window_bounds = array<i64: 8, 16>}]} {
    %c0 = arith.constant 0 : index
    %c0_0 = arith.constant 0 : index
    %0 = vector.load %arg1[%c0, %c0_0] : memref<8x8xf32, #tpu.memory_space<vmem>>, vector<8x8xf32>
    %1 = arith.truncf %0 : vector<8x8xf32> to vector<8x8xbf16>
    %c0_1 = arith.constant 0 : index
    %c0_2 = arith.constant 0 : index
    %2 = vector.load %arg2[%c0_1, %c0_2] : memref<8x4xf32, #tpu.memory_space<vmem>>, vector<8x4xf32>
    %3 = arith.truncf %2 : vector<8x4xf32> to vector<8x4xbf16>
    %c0_3 = arith.constant 0 : index
    %c0_4 = arith.constant 0 : index
    %4 = vector.load %arg3[%c0_3, %c0_4] : memref<8x128xbf16, #tpu.memory_space<vmem>>, vector<8x128xbf16>
    %cst = arith.constant dense<0.000000e+00> : vector<8x128xf32>
    %5 = tpu.matmul %1, %4, %cst {dimension_numbers = #tpu.dot_dimension_numbers<[1], [0], [0], [1], [0, 0, 1, 1], [], []>} : vector<8x8xbf16>, vector<8x128xbf16>, vector<8x128xf32> -> vector<8x128xf32>
    %c0_5 = arith.constant 0 : index
    %c0_6 = arith.constant 0 : index
    %6 = vector.load %arg4[%c0_5, %c0_6] : memref<4x128xbf16, #tpu.memory_space<vmem>>, vector<4x128xbf16>
    %cst_7 = arith.constant dense<0.000000e+00> : vector<8x128xf32>
    %7 = tpu.matmul %3, %6, %cst_7 {dimension_numbers = #tpu.dot_dimension_numbers<[1], [0], [0], [1], [0, 0, 1, 1], [], []>} : vector<8x4xbf16>, vector<4x128xbf16>, vector<8x128xf32> -> vector<8x128xf32>
    %8 = arith.addf %5, %7 : vector<8x128xf32>
    %c0_8 = arith.constant 0 : index
    %c0_9 = arith.constant 0 : index
    %9 = vector.load %arg5[%c0_8, %c0_9] : memref<1x128xf32, #tpu.memory_space<vmem>>, vector<1x128xf32>
    %10 = vector.broadcast %9 : vector<1x128xf32> to vector<8x128xf32>
    %11 = arith.addf %8, %10 : vector<8x128xf32>
    %cst_10 = arith.constant 0.000000e+00 : f32
    %12 = vector.broadcast %cst_10 : f32 to vector<8x128xf32>
    %13 = arith.maximumf %11, %12 : vector<8x128xf32>
    %14 = arith.truncf %13 : vector<8x128xf32> to vector<8x128xbf16>
    %c0_11 = arith.constant 0 : index
    %c0_12 = arith.constant 0 : index
    %15 = vector.load %arg6[%c0_11, %c0_12] : memref<128x128xbf16, #tpu.memory_space<vmem>>, vector<128x128xbf16>
    %cst_13 = arith.constant dense<0.000000e+00> : vector<8x128xf32>
    %16 = tpu.matmul %14, %15, %cst_13 {dimension_numbers = #tpu.dot_dimension_numbers<[1], [0], [0], [1], [0, 0, 1, 1], [], []>} : vector<8x128xbf16>, vector<128x128xbf16>, vector<8x128xf32> -> vector<8x128xf32>
    %c0_14 = arith.constant 0 : index
    %c0_15 = arith.constant 0 : index
    %17 = vector.load %arg7[%c0_14, %c0_15] : memref<1x128xf32, #tpu.memory_space<vmem>>, vector<1x128xf32>
    %18 = vector.broadcast %17 : vector<1x128xf32> to vector<8x128xf32>
    %19 = arith.addf %16, %18 : vector<8x128xf32>
    %cst_16 = arith.constant 0.000000e+00 : f32
    %20 = vector.broadcast %cst_16 : f32 to vector<8x128xf32>
    %21 = arith.maximumf %19, %20 : vector<8x128xf32>
    %22 = arith.truncf %21 : vector<8x128xf32> to vector<8x128xbf16>
    %c0_17 = arith.constant 0 : index
    %c0_18 = arith.constant 0 : index
    %23 = vector.load %arg8[%c0_17, %c0_18] : memref<128x16xbf16, #tpu.memory_space<vmem>>, vector<128x16xbf16>
    %cst_19 = arith.constant dense<0.000000e+00> : vector<8x16xf32>
    %24 = tpu.matmul %22, %23, %cst_19 {dimension_numbers = #tpu.dot_dimension_numbers<[1], [0], [0], [1], [0, 0, 1, 1], [], []>} : vector<8x128xbf16>, vector<128x16xbf16>, vector<8x16xf32> -> vector<8x16xf32>
    %c0_20 = arith.constant 0 : index
    %c0_21 = arith.constant 0 : index
    %25 = vector.load %arg9[%c0_20, %c0_21] : memref<1x16xf32, #tpu.memory_space<vmem>>, vector<1x16xf32>
    %26 = vector.broadcast %25 : vector<1x16xf32> to vector<8x16xf32>
    %27 = arith.addf %24, %26 : vector<8x16xf32>
    %28 = tpu.iota {dimensions = array<i32: 1>} : vector<8x16xi32>
    %29 = arith.negf %27 : vector<8x16xf32>
    %30 = math.exp %29 : vector<8x16xf32>
    %cst_22 = arith.constant 1.000000e+00 : f32
    %31 = vector.broadcast %cst_22 : f32 to vector<8x16xf32>
    %32 = arith.addf %31, %30 : vector<8x16xf32>
    %33 = arith.divf %31, %32 : vector<8x16xf32>
    %cst_23 = arith.constant 1.000000e-03 : f32
    %34 = vector.broadcast %cst_23 : f32 to vector<8x16xf32>
    %35 = arith.maximumf %33, %34 : vector<8x16xf32>
    %c8_i32 = arith.constant 8 : i32
    %36 = vector.broadcast %c8_i32 : i32 to vector<8x16xi32>
    %37 = arith.cmpi sge, %28, %36 : vector<8x16xi32>
    %38 = arith.select %37, %35, %27 : vector<8x16xi1>, vector<8x16xf32>
    %c0_24 = arith.constant 0 : index
    %c0_25 = arith.constant 0 : index
    %39 = vector.load %arg10[%c0_24, %c0_25] : memref<8x16xf32, #tpu.memory_space<vmem>>, vector<8x16xf32>
    tpu.vector_store %arg10[%c0_24, %c0_25], %38 {strides = array<i32>} : memref<8x16xf32, #tpu.memory_space<vmem>>, vector<8x16xf32>,
    return
  }
  func.func @transform_0(%arg0: i32) -> (i32, i32) {
    %c0_i32 = arith.constant 0 : i32
    %c0_i32_0 = arith.constant 0 : i32
    return %arg0, %c0_i32 : i32, i32
  }
  func.func @transform_1(%arg0: i32) -> (i32, i32) {
    %c0_i32 = arith.constant 0 : i32
    %c0_i32_0 = arith.constant 0 : i32
    return %arg0, %c0_i32 : i32, i32
  }
  func.func @transform_2(%arg0: i32) -> (i32, i32) {
    %c0_i32 = arith.constant 0 : i32
    %c0_i32_0 = arith.constant 0 : i32
    %c0_i32_1 = arith.constant 0 : i32
    return %c0_i32, %c0_i32_0 : i32, i32
  }
  func.func @transform_3(%arg0: i32) -> (i32, i32) {
    %c0_i32 = arith.constant 0 : i32
    %c0_i32_0 = arith.constant 0 : i32
    %c0_i32_1 = arith.constant 0 : i32
    return %c0_i32, %c0_i32_0 : i32, i32
  }
  func.func @transform_4(%arg0: i32) -> (i32, i32) {
    %c0_i32 = arith.constant 0 : i32
    %c0_i32_0 = arith.constant 0 : i32
    %c0_i32_1 = arith.constant 0 : i32
    return %c0_i32, %c0_i32_0 : i32, i32
  }
  func.func @transform_5(%arg0: i32) -> (i32, i32) {
    %c0_i32 = arith.constant 0 : i32
    %c0_i32_0 = arith.constant 0 : i32
    %c0_i32_1 = arith.constant 0 : i32
    return %c0_i32, %c0_i32_0 : i32, i32
  }
  func.func @transform_6(%arg0: i32) -> (i32, i32) {
    %c0_i32 = arith.constant 0 : i32
    %c0_i32_0 = arith.constant 0 : i32
    %c0_i32_1 = arith.constant 0 : i32
    return %c0_i32, %c0_i32_0 : i32, i32
  }
  func.func @transform_7(%arg0: i32) -> (i32, i32) {
    %c0_i32 = arith.constant 0 : i32
    %c0_i32_0 = arith.constant 0 : i32
    %c0_i32_1 = arith.constant 0 : i32
    return %c0_i32, %c0_i32_0 : i32, i32
  }
  func.func @transform_8(%arg0: i32) -> (i32, i32) {
    %c0_i32 = arith.constant 0 : i32
    %c0_i32_0 = arith.constant 0 : i32
    %c0_i32_1 = arith.constant 0 : i32
    return %c0_i32, %c0_i32_0 : i32, i32
  }
  func.func @transform_9(%arg0: i32) -> (i32, i32) {
    %c0_i32 = arith.constant 0 : i32
    %c0_i32_0 = arith.constant 0 : i32
    return %arg0, %c0_i32 : i32, i32
  }
}

</mosaic_0001>

<llo_original>
// kernel: dynamics_forward.1
$region0: #{dynamics_forward.1}
  #allocation0 [shape = 'u32[]', space=smem, size = 0x4, offset = 0x4, fixed_abs, tag = 'smem constant byte address 0x4 - core index']
  #allocation1 [shape = 'u32[144,128]{1,0:T(1,128)}', space=vmem, size = 0x12000, scoped, tag = 'internal scratch']
  %s0 = inlined_call_operand.vmem [shape: f32[8,8], index: 0, kind: input, shape index: {}]
  %s1 = inlined_call_operand.vmem [shape: f32[8,4], index: 1, kind: input, shape index: {}]
  %s2 = inlined_call_operand.vmem [shape: bf16[8,128], index: 2, kind: input, shape index: {}]
  %s3 = inlined_call_operand.vmem [shape: bf16[4,128], index: 3, kind: input, shape index: {}]
  %s4 = inlined_call_operand.vmem [shape: f32[1,128], index: 4, kind: input, shape index: {}]
  %s5 = inlined_call_operand.vmem [shape: bf16[128,128], index: 5, kind: input, shape index: {}]
  %s6 = inlined_call_operand.vmem [shape: f32[1,128], index: 6, kind: input, shape index: {}]
  %s7 = inlined_call_operand.vmem [shape: bf16[128,16], index: 7, kind: input, shape index: {}]
  %s8 = inlined_call_operand.vmem [shape: f32[1,16], index: 8, kind: input, shape index: {}]
  %s9 = inlined_call_operand.vmem [shape: f32[8,16], index: 9, kind: output, shape index: {}]
  %s10 = sld [smem:[#allocation0]]
  $region46: #{dynamics_forward.1} parent=0
    _
  %s12 = ssub.s32 1, %s10
  %s13 = scalar_select 0, %s12, %s10
  // Predicated region
  $region2: #{dynamics_forward.1} parent=0 // pred_check
    _
  $region3: #{dynamics_forward.1} parent=0 // pred_check_branch
    %15 = sbr.rel (0) target = $region5
  $region4: #{dynamics_forward.1} parent=0 // pred_region
    _
  $region5: #{dynamics_forward.1} parent=0 // pred_fallthru
    _
  // Predicated region
  $region6: #{dynamics_forward.1} parent=0 // pred_check
    _
  $region7: #{dynamics_forward.1} parent=0 // pred_check_branch
    %17 = sbr.rel (0) target = $region9
  $region8: #{dynamics_forward.1} parent=0 // pred_region
    _
  $region9: #{dynamics_forward.1} parent=0 // pred_fallthru
    _
  // Predicated region
  $region10: #{dynamics_forward.1} parent=0 // pred_check
    _
  $region11: #{dynamics_forward.1} parent=0 // pred_check_branch
    %19 = sbr.rel (0) target = $region13
  $region12: #{dynamics_forward.1} parent=0 // pred_region
    _
  $region13: #{dynamics_forward.1} parent=0 // pred_fallthru
    _
  // Predicated region
  $region14: #{dynamics_forward.1} parent=0 // pred_check
    _
  $region15: #{dynamics_forward.1} parent=0 // pred_check_branch
    %21 = sbr.rel (0) target = $region17
  $region16: #{dynamics_forward.1} parent=0 // pred_region
    _
  $region17: #{dynamics_forward.1} parent=0 // pred_fallthru
    _
  // Predicated region
  $region18: #{dynamics_forward.1} parent=0 // pred_check
    _
  $region19: #{dynamics_forward.1} parent=0 // pred_check_branch
    %23 = sbr.rel (0) target = $region21
  $region20: #{dynamics_forward.1} parent=0 // pred_region
    _
  $region21: #{dynamics_forward.1} parent=0 // pred_fallthru
    _
  // Predicated region
  $region22: #{dynamics_forward.1} parent=0 // pred_check
    _
  $region23: #{dynamics_forward.1} parent=0 // pred_check_branch
    %25 = sbr.rel (0) target = $region25
  $region24: #{dynamics_forward.1} parent=0 // pred_region
    _
  $region25: #{dynamics_forward.1} parent=0 // pred_fallthru
    _
  // Predicated region
  $region26: #{dynamics_forward.1} parent=0 // pred_check
    _
  $region27: #{dynamics_forward.1} parent=0 // pred_check_branch
    %27 = sbr.rel (0) target = $region29
  $region28: #{dynamics_forward.1} parent=0 // pred_region
    _
  $region29: #{dynamics_forward.1} parent=0 // pred_fallthru
    _
  // Predicated region
  $region30: #{dynamics_forward.1} parent=0 // pred_check
    _
  $region31: #{dynamics_forward.1} parent=0 // pred_check_branch
    %29 = sbr.rel (0) target = $region33
  $region32: #{dynamics_forward.1} parent=0 // pred_region
    _
  $region33: #{dynamics_forward.1} parent=0 // pred_fallthru
    _
  // Predicated region
  $region34: #{dynamics_forward.1} parent=0 // pred_check
    _
  $region35: #{dynamics_forward.1} parent=0 // pred_check_branch
    %31 = sbr.rel (0) target = $region37
  $region36: #{dynamics_forward.1} parent=0 // pred_region
    _
  $region37: #{dynamics_forward.1} parent=0 // pred_fallthru
    _
  %v33 = vld [vmem:[%s0] sm:$0xff]
  %v34 = vpack.c.bf16 %v33, %v33
  %v35 = vld [vmem:[%s1] sm:$0xff]
  %v36 = vpack.c.bf16 %v35, %v35
  %v37 = vld [vmem:[%s2] sm:$0xf]
  %v38 = vld [vmem:[%s3] sm:$0x3]
  %vm39 = vcmask 31744
  %v41 = vsel %vm39, %v36, 0
  %vm43 = vcmask 1041408
  %v45 = vsel %vm43, %v38, 0
  %47 = vmatprep.subr.bf16.mxu0 0
  %48 = vmatpush1.bf16.msra.mxu0 %v45
  %49 = vmatprep.subr.bf16.mxu0 0
  %50 = vmatpush1.bf16.msra.mxu0 0
  %51 = vmatprep.subr.bf16.mxu0 0
  %52 = vmatpush1.bf16.msra.mxu0 0
  %53 = vmatprep.subr.bf16.mxu0 0
  %54 = vmatpush1.bf16.msra.mxu0 0
  %55 = vmatprep.subr.bf16.mxu0 0
  %56 = vmatpush1.bf16.msra.mxu0 0
  %57 = vmatprep.subr.bf16.mxu0 0
  %58 = vmatpush1.bf16.msra.mxu0 0
  %59 = vmatprep.subr.bf16.mxu0 0
  %60 = vmatpush1.bf16.msra.mxu0 0
  %61 = vmatprep.subr.bf16.mxu0 0
  %62 = vmatpush1.bf16.msra.mxu0 0
  %63 = vmatprep.subr.bf16.mxu0 0
  %64 = vmatpush1.bf16.msra.mxu0 0
  %65 = vmatprep.subr.bf16.mxu0 0
  %66 = vmatpush1.bf16.msra.mxu0 0
  %67 = vmatprep.subr.bf16.mxu0 0
  %68 = vmatpush1.bf16.msra.mxu0 0
  %69 = vmatprep.subr.bf16.mxu0 0
  %70 = vmatpush1.bf16.msra.mxu0 0
  %71 = vmatprep.subr.bf16.mxu0 0
  %72 = vmatpush1.bf16.msra.mxu0 0
  %73 = vmatprep.subr.bf16.mxu0 0
  %74 = vmatpush1.bf16.msra.mxu0 0
  %75 = vmatprep.subr.bf16.mxu0 0
  %76 = vmatpush1.bf16.msra.mxu0 0
  %77 = vmatprep.subr.bf16.mxu0 0
  %78 = vmatpush1.bf16.msra.mxu0 0
  %79 = vmatprep.mubr.bf16.mxu0 0
  %80 = vmatmul.mubr.bf16.gmra.mrb[0].mxu0 %v41
  %v81 = vpop.f32.mrb[0].mxu0
  %v82 = vadd.f32 0.0, %v81
  %v83 = vpop.f32.mrb[0].mxu0
  %v84 = vpop.f32.mrb[0].mxu0
  %v85 = vpop.f32.mrb[0].mxu0
  %86 = vdwg.mxu0
  %vm87 = vcmask 64512
  %v89 = vsel %vm87, %v34, 0
  %vm91 = vcmask 1043456
  %v93 = vsel %vm91, %v37, 0
  %95 = vmatprep.subr.bf16.mxu0 0
  %96 = vmatpush1.bf16.msra.mxu0 %v93
  %97 = vmatprep.subr.bf16.mxu0 0
  %98 = vmatpush1.bf16.msra.mxu0 0
  %99 = vmatprep.subr.bf16.mxu0 0
  %100 = vmatpush1.bf16.msra.mxu0 0
  %101 = vmatprep.subr.bf16.mxu0 0
  %102 = vmatpush1.bf16.msra.mxu0 0
  %103 = vmatprep.subr.bf16.mxu0 0
  %104 = vmatpush1.bf16.msra.mxu0 0
  %105 = vmatprep.subr.bf16.mxu0 0
  %106 = vmatpush1.bf16.msra.mxu0 0
  %107 = vmatprep.subr.bf16.mxu0 0
  %108 = vmatpush1.bf16.msra.mxu0 0
  %109 = vmatprep.subr.bf16.mxu0 0
  %110 = vmatpush1.bf16.msra.mxu0 0
  %111 = vmatprep.subr.bf16.mxu0 0
  %112 = vmatpush1.bf16.msra.mxu0 0
  %113 = vmatprep.subr.bf16.mxu0 0
  %114 = vmatpush1.bf16.msra.mxu0 0
  %115 = vmatprep.subr.bf16.mxu0 0
  %116 = vmatpush1.bf16.msra.mxu0 0
  %117 = vmatprep.subr.bf16.mxu0 0
  %118 = vmatpush1.bf16.msra.mxu0 0
  %119 = vmatprep.subr.bf16.mxu0 0
  %120 = vmatpush1.bf16.msra.mxu0 0
  %121 = vmatprep.subr.bf16.mxu0 0
  %122 = vmatpush1.bf16.msra.mxu0 0
  %123 = vmatprep.subr.bf16.mxu0 0
  %124 = vmatpush1.bf16.msra.mxu0 0
  %125 = vmatprep.subr.bf16.mxu0 0
  %126 = vmatpush1.bf16.msra.mxu0 0
  %127 = vmatprep.mubr.bf16.mxu0 0
  %128 = vmatmul.mubr.bf16.gmra.mrb[0].mxu0 %v89
  %v129 = vpop.f32.mrb[0].mxu0
  %v130 = vadd.f32 %v82, %v129
  %v131 = vpop.f32.mrb[0].mxu0
  %v132 = vpop.f32.mrb[0].mxu0
  %v133 = vpop.f32.mrb[0].mxu0
  %134 = vdwg.mxu0
  %v135 = vld [vmem:[%s4] sm:$0x1]
  %v137 = vlaneseq
  %v138 = vshrl.u32 %v137, 7
  %v139 = vsub.s32 0, %v138
  %v140 = vrot.slane %v135, %v139
  %v142 = vadd.f32 %v130, %v140
  %v143 = vmax.f32 %v142, 0.0
  %v144 = vpack.c.bf16 %v143, %v143
  %v145 = vld [vmem:[%s5] sm:$0xf]
  %v146 = vld [vmem:[%s5 + $0x4] sm:$0xf]
  %v147 = vld [vmem:[%s5 + $0x8] sm:$0xf]
  %v148 = vld [vmem:[%s5 + $0xc] sm:$0xf]
  %v149 = vld [vmem:[%s5 + $0x10] sm:$0xf]
  %v150 = vld [vmem:[%s5 + $0x14] sm:$0xf]
  %v151 = vld [vmem:[%s5 + $0x18] sm:$0xf]
  %v152 = vld [vmem:[%s5 + $0x1c] sm:$0xf]
  %v153 = vld [vmem:[%s5 + $0x20] sm:$0xf]
  %v154 = vld [vmem:[%s5 + $0x24] sm:$0xf]
  %v155 = vld [vmem:[%s5 + $0x28] sm:$0xf]
  %v156 = vld [vmem:[%s5 + $0x2c] sm:$0xf]
  %v157 = vld [vmem:[%s5 + $0x30] sm:$0xf]
  %v158 = vld [vmem:[%s5 + $0x34] sm:$0xf]
  %v159 = vld [vmem:[%s5 + $0x38] sm:$0xf]
  %v160 = vld [vmem:[%s5 + $0x3c] sm:$0xf]
  %v161 = vld [vmem:[%s6] sm:$0x1]
  %v163 = vlaneseq
  %v164 = vshrl.u32 %v163, 7
  %v165 = vsub.s32 0, %v164
  %v166 = vrot.slane %v161, %v165
  %v184 = vunpack.c.l.b16 %v145
  %v185 = vunpack.c.l.b16 %v146
  %v186 = vunpack.c.l.b16 %v147
  %v187 = vunpack.c.l.b16 %v148
  %v188 = vunpack.c.l.b16 %v149
  %v189 = vunpack.c.l.b16 %v150
  %v190 = vunpack.c.l.b16 %v151
  %v191 = vunpack.c.l.b16 %v152
  %v192 = vunpack.c.l.b16 %v153
  %v193 = vunpack.c.l.b16 %v154
  %v194 = vunpack.c.l.b16 %v155
  %v195 = vunpack.c.l.b16 %v156
  %v196 = vunpack.c.l.b16 %v157
  %v197 = vunpack.c.l.b16 %v158
  %v198 = vunpack.c.l.b16 %v159
  %v199 = vunpack.c.l.b16 %v160
  %v200 = vpack.c.b16 %v185, %v184
  %v201 = vpack.c.b16 %v187, %v186
  %v202 = vpack.c.b16 %v189, %v188
  %v203 = vpack.c.b16 %v191, %v190
  %v204 = vpack.c.b16 %v193, %v192
  %v205 = vpack.c.b16 %v195, %v194
  %v206 = vpack.c.b16 %v197, %v196
  %v207 = vpack.c.b16 %v199, %v198
  %216 = vmatprep.subr.bf16.mxu0 0
  %217 = vmatpush1.bf16.msra.mxu0 %v200
  %218 = vmatprep.subr.bf16.mxu0 0
  %219 = vmatpush1.bf16.msra.mxu0 %v201
  %220 = vmatprep.subr.bf16.mxu0 0
  %221 = vmatpush1.bf16.msra.mxu0 %v202
  %222 = vmatprep.subr.bf16.mxu0 0
  %223 = vmatpush1.bf16.msra.mxu0 %v203
  %224 = vmatprep.subr.bf16.mxu0 0
  %225 = vmatpush1.bf16.msra.mxu0 %v204
  %226 = vmatprep.subr.bf16.mxu0 0
  %227 = vmatpush1.bf16.msra.mxu0 %v205
  %228 = vmatprep.subr.bf16.mxu0 0
  %229 = vmatpush1.bf16.msra.mxu0 %v206
  %230 = vmatprep.subr.bf16.mxu0 0
  %231 = vmatpush1.bf16.msra.mxu0 %v207
  %232 = vmatprep.subr.bf16.mxu0 0
  %233 = vmatpush1.bf16.msra.mxu0 0
  %234 = vmatprep.subr.bf16.mxu0 0
  %235 = vmatpush1.bf16.msra.mxu0 0
  %236 = vmatprep.subr.bf16.mxu0 0
  %237 = vmatpush1.bf16.msra.mxu0 0
  %238 = vmatprep.subr.bf16.mxu0 0
  %239 = vmatpush1.bf16.msra.mxu0 0
  %240 = vmatprep.subr.bf16.mxu0 0
  %241 = vmatpush1.bf16.msra.mxu0 0
  %242 = vmatprep.subr.bf16.mxu0 0
  %243 = vmatpush1.bf16.msra.mxu0 0
  %244 = vmatprep.subr.bf16.mxu0 0
  %245 = vmatpush1.bf16.msra.mxu0 0
  %246 = vmatprep.subr.bf16.mxu0 0
  %247 = vmatpush1.bf16.msra.mxu0 0
  %248 = vmatprep.mubr.bf16.mxu0 0
  %249 = vmatmul.mubr.bf16.gmra.mrb[0].mxu0 %v144
  %v250 = vpop.f32.mrb[0].mxu0
  %v251 = vadd.f32 %v166, %v250
  %v252 = vpop.f32.mrb[0].mxu0
  %v253 = vpop.f32.mrb[0].mxu0
  %v254 = vpop.f32.mrb[0].mxu0
  %255 = vdwg.mxu0
  %v256 = vmax.f32 %v251, 0.0
  %v257 = vpack.c.bf16 %v256, %v256
  %v258 = vld [vmem:[%s7] sm:$0xf]
  %v259 = vld [vmem:[%s7 + $0x4] sm:$0xf]
  %v260 = vld [vmem:[%s7 + $0x8] sm:$0xf]
  %v261 = vld [vmem:[%s7 + $0xc] sm:$0xf]
  %v262 = vld [vmem:[%s7 + $0x10] sm:$0xf]
  %v263 = vld [vmem:[%s7 + $0x14] sm:$0xf]
  %v264 = vld [vmem:[%s7 + $0x18] sm:$0xf]
  %v265 = vld [vmem:[%s7 + $0x1c] sm:$0xf]
  %v266 = vld [vmem:[%s7 + $0x20] sm:$0xf]
  %v267 = vld [vmem:[%s7 + $0x24] sm:$0xf]
  %v268 = vld [vmem:[%s7 + $0x28] sm:$0xf]
  %v269 = vld [vmem:[%s7 + $0x2c] sm:$0xf]
  %v270 = vld [vmem:[%s7 + $0x30] sm:$0xf]
  %v271 = vld [vmem:[%s7 + $0x34] sm:$0xf]
  %v272 = vld [vmem:[%s7 + $0x38] sm:$0xf]
  %v273 = vld [vmem:[%s7 + $0x3c] sm:$0xf]
  %v274 = vld [vmem:[%s8] sm:$0x1]
  %v276 = vlaneseq
  %v277 = vshrl.u32 %v276, 7
  %v278 = vsub.s32 0, %v277
  %v279 = vrot.slane %v274, %v278
  %v297 = vunpack.c.l.b16 %v258
  %v298 = vunpack.c.l.b16 %v259
  %v299 = vunpack.c.l.b16 %v260
  %v300 = vunpack.c.l.b16 %v261
  %v301 = vunpack.c.l.b16 %v262
  %v302 = vunpack.c.l.b16 %v263
  %v303 = vunpack.c.l.b16 %v264
  %v304 = vunpack.c.l.b16 %v265
  %v305 = vunpack.c.l.b16 %v266
  %v306 = vunpack.c.l.b16 %v267
  %v307 = vunpack.c.l.b16 %v268
  %v308 = vunpack.c.l.b16 %v269
  %v309 = vunpack.c.l.b16 %v270
  %v310 = vunpack.c.l.b16 %v271
  %v311 = vunpack.c.l.b16 %v272
  %v312 = vunpack.c.l.b16 %v273
  %v313 = vpack.c.b16 %v298, %v297
  %v314 = vpack.c.b16 %v300, %v299
  %v315 = vpack.c.b16 %v302, %v301
  %v316 = vpack.c.b16 %v304, %v303
  %v317 = vpack.c.b16 %v306, %v305
  %v318 = vpack.c.b16 %v308, %v307
  %v319 = vpack.c.b16 %v310, %v309
  %v320 = vpack.c.b16 %v312, %v311
  %329 = vmatprep.subr.bf16.mxu0 0
  %330 = vmatpush1.bf16.msra.mxu0 %v313
  %331 = vmatprep.subr.bf16.mxu0 0
  %332 = vmatpush1.bf16.msra.mxu0 %v314
  %333 = vmatprep.subr.bf16.mxu0 0
  %334 = vmatpush1.bf16.msra.mxu0 %v315
  %335 = vmatprep.subr.bf16.mxu0 0
  %336 = vmatpush1.bf16.msra.mxu0 %v316
  %337 = vmatprep.subr.bf16.mxu0 0
  %338 = vmatpush1.bf16.msra.mxu0 %v317
  %339 = vmatprep.subr.bf16.mxu0 0
  %340 = vmatpush1.bf16.msra.mxu0 %v318
  %341 = vmatprep.subr.bf16.mxu0 0
  %342 = vmatpush1.bf16.msra.mxu0 %v319
  %343 = vmatprep.subr.bf16.mxu0 0
  %344 = vmatpush1.bf16.msra.mxu0 %v320
  %345 = vmatprep.subr.bf16.mxu0 0
  %346 = vmatpush1.bf16.msra.mxu0 0
  %347 = vmatprep.subr.bf16.mxu0 0
  %348 = vmatpush1.bf16.msra.mxu0 0
  %349 = vmatprep.subr.bf16.mxu0 0
  %350 = vmatpush1.bf16.msra.mxu0 0
  %351 = vmatprep.subr.bf16.mxu0 0
  %352 = vmatpush1.bf16.msra.mxu0 0
  %353 = vmatprep.subr.bf16.mxu0 0
  %354 = vmatpush1.bf16.msra.mxu0 0
  %355 = vmatprep.subr.bf16.mxu0 0
  %356 = vmatpush1.bf16.msra.mxu0 0
  %357 = vmatprep.subr.bf16.mxu0 0
  %358 = vmatpush1.bf16.msra.mxu0 0
  %359 = vmatprep.subr.bf16.mxu0 0
  %360 = vmatpush1.bf16.msra.mxu0 0
  %361 = vmatprep.mubr.bf16.mxu0 0
  %362 = vmatmul.mubr.bf16.gmra.mrb[0].mxu0 %v257
  %v363 = vpop.f32.mrb[0].mxu0
  %v364 = vadd.f32 %v279, %v363
  %v365 = vpop.f32.mrb[0].mxu0
  %v366 = vpop.f32.mrb[0].mxu0
  %v367 = vpop.f32.mrb[0].mxu0
  %368 = vdwg.mxu0
  %v369 = vlaneseq
  %v370 = vand.u32 %v369, 127
  %v371 = vxor.u32 %v364, 2147483648
  %v372 = vmul.f32 %v371, 1.442695
  %v373 = vpow.pop %v372
  %v374 = vadd.f32 %v373, 1.0
  %v375 = vrcp.pop %v374
  %v376 = vmul.f32 1.0, %v375
  %v377 = vmax.f32 %v376, 0.001
  %vm378 = vcmp.ge.s32.totalorder %v370, 8
  %v379 = vsel %vm378, %v377, %v364
  %vm380 = vcmask 130048
  %381 = vst.msk [vmem:[%s9] sm:$0xff] %vm380, %v379
  // Predicated region
  $region38: #{dynamics_forward.1} parent=0 // pred_check
    _
  $region39: #{dynamics_forward.1} parent=0 // pred_check_branch
    %383 = sbr.rel (0) target = $region41
  $region40: #{dynamics_forward.1} parent=0 // pred_region
    _
  $region41: #{dynamics_forward.1} parent=0 // pred_fallthru
    _
  // Predicated region
  $region42: #{dynamics_forward.1} parent=0 // pred_check
    _
  $region43: #{dynamics_forward.1} parent=0 // pred_check_branch
    %385 = sbr.rel (0) target = $region45
  $region44: #{dynamics_forward.1} parent=0 // pred_region
    _
  $region45: #{dynamics_forward.1} parent=0 // pred_fallthru
    _

</llo_original>
